<compile_context>
chip_gen: v7x
topology: tpu7x:2x2x1
jax: 0.10.0
libtpu: 0.0.40
codegen_flags: <defaults>
</compile_context>

<pallas_src>
import functools

import jax
import jax.numpy as jnp
from jax import lax
from jax.experimental import pallas as pl
from jax.experimental.pallas import tpu as pltpu


# -----------------------------------------------------------------------------
# Pass 1: fused [Q | K | V] 1x1-conv projection (once per feature-map row).
# -----------------------------------------------------------------------------
def _qkv_proj_kernel(x_ref, w_ref, b_ref, q_ref, k_ref, v_ref, *, Cp):
    x = x_ref[...].astype(jnp.bfloat16)                                    # (t, C)
    y = jnp.dot(x, w_ref[...], preferred_element_type=jnp.float32)         # (t, 2*Cp+C)
    y = y + b_ref[...]
    # Slices fall on 128-lane boundaries (Cp is a multiple of 128).
    q_ref[...] = y[:, :Cp].astype(jnp.bfloat16)
    k_ref[...] = y[:, Cp:2 * Cp].astype(jnp.bfloat16)
    v_ref[...] = y[:, 2 * Cp:].astype(jnp.bfloat16)


# -----------------------------------------------------------------------------
# Pass 2: flash-style attention with online softmax + gamma-scaled residual.
# -----------------------------------------------------------------------------
def _flash_attention_kernel(q_ref, k_ref, v_ref, xres_ref, gamma_ref, o_ref,
                            m_sc, l_sc, acc_sc):
    ki = pl.program_id(2)
    nk = pl.num_programs(2)

    # ---- reset online-softmax state once per (batch, query tile) ----
    @pl.when(ki == 0)
    def _():
        m_sc[...] = jnp.full(m_sc.shape, -jnp.inf, dtype=jnp.float32)
        l_sc[...] = jnp.zeros(l_sc.shape, dtype=jnp.float32)
        acc_sc[...] = jnp.zeros(acc_sc.shape, dtype=jnp.float32)

    # energy[i, j] = q[i, :] . k[j, :]  -- NT matmul via contraction dims, no .T
    s = lax.dot_general(q_ref[...], k_ref[...], (((1,), (1,)), ((), ())),
                        preferred_element_type=jnp.float32)                # (tq, tk)

    # ---- online softmax update (f32 statistics) ----
    m_prev = m_sc[...]
    m_new = jnp.maximum(m_prev, jnp.max(s, axis=-1, keepdims=True))        # (tq, 1)
    alpha = jnp.exp(m_prev - m_new)
    p = jnp.exp(s - m_new)                                                 # (tq, tk)
    l_sc[...] = alpha * l_sc[...] + jnp.sum(p, axis=-1, keepdims=True)
    acc_sc[...] = alpha * acc_sc[...] + jnp.dot(
        p.astype(jnp.bfloat16), v_ref[...], preferred_element_type=jnp.float32)
    m_sc[...] = m_new

    # ---- finalize: normalize, gamma-scale, residual ----
    @pl.when(ki == nk - 1)
    def _():
        inv_l = pl.reciprocal(l_sc[...], approx=True)
        gamma = gamma_ref[0]                                               # SMEM scalar
        o_ref[...] = gamma * (acc_sc[...] * inv_l) + xres_ref[...]


def self_attention_pallas(x_nchw, wq, bq, wk, bk, wv, bv, gamma,
                          *, tq=512, tk=512, tproj=512):
    """x_nchw: [B, C, H, W] f32.  wq/wk: (C, C//8), wv: (C, C), gamma: (1,)."""
    B, C, H, W = x_nchw.shape
    N = H * W
    C8 = wq.shape[1]
    Cp = max(128, ((C8 + 127) // 128) * 128)       # full-lane padded q/k feature dim

    tq = min(tq, N)
    tk = min(tk, N)
    tproj = min(tproj, N)
    assert N % tq == 0 and N % tk == 0 and N % tproj == 0, \
        "H*W must be divisible by the tile sizes"

    # NCHW -> [B, N, C]  (channels-last puts C on the lane axis)
    x = jnp.transpose(x_nchw, (0, 2, 3, 1)).reshape(B, N, C).astype(jnp.float32)

    # Zero-pad Wq/Wk (and biases) from C8 -> Cp columns; exact (zero cols -> 0).
    pad = Cp - C8
    wq_p = jnp.pad(wq, ((0, 0), (0, pad)))
    wk_p = jnp.pad(wk, ((0, 0), (0, pad)))
    bq_p = jnp.pad(bq, (0, pad))
    bk_p = jnp.pad(bk, (0, pad))
    w_all = jnp.concatenate([wq_p, wk_p, wv], axis=1).astype(jnp.bfloat16)  # (C, 2Cp+C)
    b_all = jnp.concatenate([bq_p, bk_p, bv]).reshape(1, 2 * Cp + C).astype(jnp.float32)
    gamma_s = gamma.reshape(1).astype(jnp.float32)

    # --------------------------- pass 1: QKV projection ---------------------------
    proj_grid = pltpu.PrefetchScalarGridSpec(
        num_scalar_prefetch=0,
        grid=(B, N // tproj),
        in_specs=[
            pl.BlockSpec((pl.Squeezed(), tproj, C), lambda b, i: (b, i, 0)),   # x rows
            pl.BlockSpec((C, 2 * Cp + C), lambda b, i: (0, 0)),                # [Wq|Wk|Wv]
            pl.BlockSpec((1, 2 * Cp + C), lambda b, i: (0, 0)),                # [bq|bk|bv]
        ],
        out_specs=[
            pl.BlockSpec((pl.Squeezed(), tproj, Cp), lambda b, i: (b, i, 0)),  # Q (padded)
            pl.BlockSpec((pl.Squeezed(), tproj, Cp), lambda b, i: (b, i, 0)),  # K (padded)
            pl.BlockSpec((pl.Squeezed(), tproj, C), lambda b, i: (b, i, 0)),   # V
        ],
    )
    q, k, v = pl.pallas_call(
        functools.partial(_qkv_proj_kernel, Cp=Cp),
        out_shape=(jax.ShapeDtypeStruct((B, N, Cp), jnp.bfloat16),
                   jax.ShapeDtypeStruct((B, N, Cp), jnp.bfloat16),
                   jax.ShapeDtypeStruct((B, N, C), jnp.bfloat16)),
        grid_spec=proj_grid,
        compiler_params=pltpu.CompilerParams(
            dimension_semantics=("parallel", "parallel")),
    )(x, w_all, b_all)

    # --------------------------- pass 2: flash attention --------------------------
    nq, nk = N // tq, N // tk
    flash_grid = pltpu.PrefetchScalarGridSpec(
        num_scalar_prefetch=0,
        grid=(B, nq, nk),
        in_specs=[
            pl.BlockSpec((pl.Squeezed(), tq, Cp), lambda b, qi, ki: (b, qi, 0)),  # Q tile
            pl.BlockSpec((pl.Squeezed(), tk, Cp), lambda b, qi, ki: (b, ki, 0)),  # K tile
            pl.BlockSpec((pl.Squeezed(), tk, C), lambda b, qi, ki: (b, ki, 0)),   # V tile
            pl.BlockSpec((pl.Squeezed(), tq, C), lambda b, qi, ki: (b, qi, 0)),   # x (residual)
            pl.BlockSpec(memory_space=pltpu.MemorySpace.SMEM),                    # gamma
        ],
        out_specs=pl.BlockSpec((pl.Squeezed(), tq, C), lambda b, qi, ki: (b, qi, 0)),
        scratch_shapes=[
            pltpu.VMEM((tq, 1), jnp.float32),     # running max
            pltpu.VMEM((tq, 1), jnp.float32),     # running denom
            pltpu.VMEM((tq, C), jnp.float32),     # output accumulator
        ],
    )
    # Actual double-buffered footprint + headroom (review: don't blanket-request
    # 48 MiB; v7x only has 64 MiB physical VMEM).
    vmem_est = (2 * (tq * Cp * 2 + tk * Cp * 2 + tk * C * 2 + tq * C * 4)   # inputs
                + 2 * (tq * C * 4)                                          # output
                + tq * C * 4 + 2 * tq * 4)                                  # scratch
    vmem_limit = int(max(2 * vmem_est, 16 * 1024 * 1024))

    out = pl.pallas_call(
        _flash_attention_kernel,
        out_shape=jax.ShapeDtypeStruct((B, N, C), jnp.float32),
        grid_spec=flash_grid,
        compiler_params=pltpu.CompilerParams(
            dimension_semantics=("parallel", "parallel", "arbitrary"),
            vmem_limit_bytes=vmem_limit),
    )(q, k, v, x, gamma_s)

    # [B, N, C] -> NCHW
    return jnp.transpose(out.reshape(B, H, W, C), (0, 3, 1, 2))


def self_attention_ref(x_nchw, wq, bq, wk, bk, wv, bv, gamma):
    """Pure-JAX f32 reference mirroring the PyTorch forward exactly."""
    B, C, H, W = x_nchw.shape
    N = H * W
    xf = x_nchw.reshape(B, C, N)                                 # [B, C, N]
    q = jnp.einsum('co,bcn->bon', wq, xf) + bq[None, :, None]    # [B, C8, N]
    k = jnp.einsum('co,bcn->bon', wk, xf) + bk[None, :, None]    # [B, C8, N]
    v = jnp.einsum('co,bcn->bon', wv, xf) + bv[None, :, None]    # [B, C, N]
    energy = jnp.einsum('bci,bcj->bij', q, k)                    # query^T @ key
    attn = jax.nn.softmax(energy, axis=-1)
    out = jnp.einsum('bcj,bij->bci', v, attn)                    # value @ attn^T
    out = out.reshape(B, C, H, W)
    return gamma.reshape(()) * out + x_nchw


if __name__ == "__main__":
    # C a multiple of 128 keeps the output stores lane-dense; H*W = 512 with
    # tq = tk = 256 gives grid (B, 2, 2): exercises query tiling and the
    # multi-block online-softmax path with production-sized (>=256) tiles.
    B, C, H, W = 2, 128, 16, 32
    C8 = C // 8

    key = jax.random.PRNGKey(0)
    k0, k1, k2, k3, k4, k5, k6 = jax.random.split(key, 7)

    x = jax.random.normal(k0, (B, C, H, W), dtype=jnp.float32)

    # Deterministic synthetic parameters (Conv2d 1x1 kernels stored as [C_in, C_out]).
    wq = jax.random.normal(k1, (C, C8), dtype=jnp.float32) * 0.05
    bq = jax.random.normal(k2, (C8,), dtype=jnp.float32) * 0.05
    wk = jax.random.normal(k3, (C, C8), dtype=jnp.float32) * 0.05
    bk = jax.random.normal(k4, (C8,), dtype=jnp.float32) * 0.05
    wv = jax.random.normal(k5, (C, C), dtype=jnp.float32) * 0.05
    bv = jax.random.normal(k6, (C,), dtype=jnp.float32) * 0.05
    # nn.Parameter(torch.zeros(1)) in the module; nonzero here so the attention
    # path actually contributes to the output.
    gamma = jnp.array([0.5], dtype=jnp.float32)

    out = self_attention_pallas(x, wq, bq, wk, bk, wv, bv, gamma,
                                tq=256, tk=256, tproj=256)
    out = jax.block_until_ready(out)

    ref = self_attention_ref(x, wq, bq, wk, bk, wv, bv, gamma)
    assert out.shape == (B, C, H, W)
    # bf16 MXU operands / bf16 Q,K,V storage with f32 accumulation -> loose
    # tolerance vs the all-f32 reference.
    assert jnp.allclose(out, ref, atol=5e-2, rtol=5e-2), "mismatch vs reference"

    print("KERNEL_OK")
</pallas_src>

<mosaic_0001>
module attributes {stable_mosaic.version = 11 : i64} {
  func.func @_qkv_proj_kernel(%arg0: i32, %arg1: i32, %arg2: memref<1x256x128xf32, #tpu.memory_space<vmem>>, %arg3: memref<128x384xbf16, #tpu.memory_space<vmem>>, %arg4: memref<1x384xf32, #tpu.memory_space<vmem>>, %arg5: memref<1x256x128xbf16, #tpu.memory_space<vmem>>, %arg6: memref<1x256x128xbf16, #tpu.memory_space<vmem>>, %arg7: memref<1x256x128xbf16, #tpu.memory_space<vmem>>) attributes {dimension_semantics = [#tpu.dimension_semantics<parallel>, #tpu.dimension_semantics<parallel>], iteration_bounds = array<i64: 2, 2>, scalar_prefetch = 0 : i64, scratch_operands = 0 : i64, tpu.core_type = #tpu.core_type<tc>, window_params = [{transform_indices = @transform_0, window_bounds = array<i64: 1, 256, 128>}, {pipeline_mode = #tpu.pipeline_mode<synchronous>, transform_indices = @transform_1, window_bounds = array<i64: 128, 384>}, {pipeline_mode = #tpu.pipeline_mode<synchronous>, transform_indices = @transform_2, window_bounds = array<i64: 1, 384>}, {transform_indices = @transform_3, window_bounds = array<i64: 1, 256, 128>}, {transform_indices = @transform_4, window_bounds = array<i64: 1, 256, 128>}, {transform_indices = @transform_5, window_bounds = array<i64: 1, 256, 128>}]} {
    %c0 = arith.constant 0 : index
    %c0_0 = arith.constant 0 : index
    %c0_1 = arith.constant 0 : index
    %0 = vector.load %arg2[%c0, %c0_0, %c0_1] : memref<1x256x128xf32, #tpu.memory_space<vmem>>, vector<1x256x128xf32>
    %1 = vector.shape_cast %0 : vector<1x256x128xf32> to vector<256x128xf32>
    %2 = arith.truncf %1 : vector<256x128xf32> to vector<256x128xbf16>
    %c0_2 = arith.constant 0 : index
    %c0_3 = arith.constant 0 : index
    %3 = vector.load %arg3[%c0_2, %c0_3] : memref<128x384xbf16, #tpu.memory_space<vmem>>, vector<128x384xbf16>
    %cst = arith.constant dense<0.000000e+00> : vector<256x384xf32>
    %4 = tpu.matmul %2, %3, %cst {dimension_numbers = #tpu.dot_dimension_numbers<[1], [0], [0], [1], [0, 0, 1, 1], [], []>} : vector<256x128xbf16>, vector<128x384xbf16>, vector<256x384xf32> -> vector<256x384xf32>
    %c0_4 = arith.constant 0 : index
    %c0_5 = arith.constant 0 : index
    %5 = vector.load %arg4[%c0_4, %c0_5] : memref<1x384xf32, #tpu.memory_space<vmem>>, vector<1x384xf32>
    %6 = vector.broadcast %5 : vector<1x384xf32> to vector<256x384xf32>
    %7 = arith.addf %4, %6 : vector<256x384xf32>
    %8 = vector.extract_strided_slice %7 {offsets = [0, 0], sizes = [256, 128], strides = [1, 1]} : vector<256x384xf32> to vector<256x128xf32>
    %9 = arith.truncf %8 : vector<256x128xf32> to vector<256x128xbf16>
    %c0_6 = arith.constant 0 : index
    %c0_7 = arith.constant 0 : index
    %c0_8 = arith.constant 0 : index
    %10 = vector.load %arg5[%c0_6, %c0_7, %c0_8] : memref<1x256x128xbf16, #tpu.memory_space<vmem>>, vector<1x256x128xbf16>
    %11 = vector.shape_cast %10 : vector<1x256x128xbf16> to vector<256x128xbf16>
    %12 = vector.shape_cast %9 : vector<256x128xbf16> to vector<1x256x128xbf16>
    tpu.vector_store %arg5[%c0_6, %c0_7, %c0_8], %12 {strides = array<i32>} : memref<1x256x128xbf16, #tpu.memory_space<vmem>>, vector<1x256x128xbf16>,
    %13 = vector.extract_strided_slice %7 {offsets = [0, 128], sizes = [256, 128], strides = [1, 1]} : vector<256x384xf32> to vector<256x128xf32>
    %14 = arith.truncf %13 : vector<256x128xf32> to vector<256x128xbf16>
    %c0_9 = arith.constant 0 : index
    %c0_10 = arith.constant 0 : index
    %c0_11 = arith.constant 0 : index
    %15 = vector.load %arg6[%c0_9, %c0_10, %c0_11] : memref<1x256x128xbf16, #tpu.memory_space<vmem>>, vector<1x256x128xbf16>
    %16 = vector.shape_cast %15 : vector<1x256x128xbf16> to vector<256x128xbf16>
    %17 = vector.shape_cast %14 : vector<256x128xbf16> to vector<1x256x128xbf16>
    tpu.vector_store %arg6[%c0_9, %c0_10, %c0_11], %17 {strides = array<i32>} : memref<1x256x128xbf16, #tpu.memory_space<vmem>>, vector<1x256x128xbf16>,
    %18 = vector.extract_strided_slice %7 {offsets = [0, 256], sizes = [256, 128], strides = [1, 1]} : vector<256x384xf32> to vector<256x128xf32>
    %19 = arith.truncf %18 : vector<256x128xf32> to vector<256x128xbf16>
    %c0_12 = arith.constant 0 : index
    %c0_13 = arith.constant 0 : index
    %c0_14 = arith.constant 0 : index
    %20 = vector.load %arg7[%c0_12, %c0_13, %c0_14] : memref<1x256x128xbf16, #tpu.memory_space<vmem>>, vector<1x256x128xbf16>
    %21 = vector.shape_cast %20 : vector<1x256x128xbf16> to vector<256x128xbf16>
    %22 = vector.shape_cast %19 : vector<256x128xbf16> to vector<1x256x128xbf16>
    tpu.vector_store %arg7[%c0_12, %c0_13, %c0_14], %22 {strides = array<i32>} : memref<1x256x128xbf16, #tpu.memory_space<vmem>>, vector<1x256x128xbf16>,
    return
  }
  func.func @transform_0(%arg0: i32, %arg1: i32) -> (i32, i32, i32) {
    %c0_i32 = arith.constant 0 : i32
    %c0_i32_0 = arith.constant 0 : i32
    return %arg0, %arg1, %c0_i32 : i32, i32, i32
  }
  func.func @transform_1(%arg0: i32, %arg1: i32) -> (i32, i32) {
    %c0_i32 = arith.constant 0 : i32
    %c0_i32_0 = arith.constant 0 : i32
    %c0_i32_1 = arith.constant 0 : i32
    return %c0_i32, %c0_i32_0 : i32, i32
  }
  func.func @transform_2(%arg0: i32, %arg1: i32) -> (i32, i32) {
    %c0_i32 = arith.constant 0 : i32
    %c0_i32_0 = arith.constant 0 : i32
    %c0_i32_1 = arith.constant 0 : i32
    return %c0_i32, %c0_i32_0 : i32, i32
  }
  func.func @transform_3(%arg0: i32, %arg1: i32) -> (i32, i32, i32) {
    %c0_i32 = arith.constant 0 : i32
    %c0_i32_0 = arith.constant 0 : i32
    return %arg0, %arg1, %c0_i32 : i32, i32, i32
  }
  func.func @transform_4(%arg0: i32, %arg1: i32) -> (i32, i32, i32) {
    %c0_i32 = arith.constant 0 : i32
    %c0_i32_0 = arith.constant 0 : i32
    return %arg0, %arg1, %c0_i32 : i32, i32, i32
  }
  func.func @transform_5(%arg0: i32, %arg1: i32) -> (i32, i32, i32) {
    %c0_i32 = arith.constant 0 : i32
    %c0_i32_0 = arith.constant 0 : i32
    return %arg0, %arg1, %c0_i32 : i32, i32, i32
  }
}

</mosaic_0001>

<llo_original>
// kernel: tpu_custom_call.1
$region0: #{tpu_custom_call.1}
  #allocation0 [shape = 'u32[]', space=smem, size = 0x4, offset = 0x4, fixed_abs, tag = 'smem constant byte address 0x4 - core index']
  #allocation1 [shape = 'u32[144,128]{1,0:T(1,128)}', space=vmem, size = 0x12000, scoped, tag = 'internal scratch']
  %s0 = inlined_call_operand.hbm [shape: f32[2,512,128], index: 0, kind: input, shape index: {}]
  %s1 = inlined_call_operand.hbm [shape: bf16[128,384], index: 1, kind: input, shape index: {}]
  %s2 = inlined_call_operand.vmem [shape: f32[1,384], index: 2, kind: input, shape index: {}]
  %s3 = inlined_call_operand.hbm [shape: bf16[2,512,128], index: 3, kind: output, shape index: {0}]
  %s4 = inlined_call_operand.hbm [shape: bf16[2,512,128], index: 4, kind: output, shape index: {1}]
  %s5 = inlined_call_operand.hbm [shape: bf16[2,512,128], index: 5, kind: output, shape index: {2}]
  %6 = xla_tuple %s3, %s4, %s5
  %s7 = sld [smem:[#allocation0]]
  $region69: #{tpu_custom_call.1} parent=0
    _
  %s9 = ssub.s32 1, %s7
  %s10 = scalar_select 0, %s9, %s7
  $region1: #{tpu_custom_call.1} parent=0
    #allocation2 [shape = 'u8[262144]{0}', space=vmem, size = 0x40000, scoped, tag = 'input window, operand 0']
    #allocation3 [shape = 's32[2]{0}', space=sflag, size = 0x8, scoped, tag = 'scoped memory for tpu_custom_call.1']
    #allocation4 [shape = 's32[2]{0}', space=sflag, size = 0x8, scoped, tag = 'scoped memory for tpu_custom_call.1']
    #allocation5 [shape = 'u8[98304]{0}', space=vmem, size = 0x18000, scoped, tag = 'input window, operand 1, single buffered']
    #allocation6 [shape = 's32[1]{0}', space=sflag, size = 0x4, scoped, tag = 'scoped memory for tpu_custom_call.1']
    #allocation7 [shape = 'u8[131072]{0}', space=vmem, size = 0x20000, scoped, tag = 'output window, operand 0']
    #allocation8 [shape = 'u8[131072]{0}', space=vmem, size = 0x20000, scoped, tag = 'output window, operand 1']
    #allocation9 [shape = 's32[2]{0}', space=sflag, size = 0x8, scoped, tag = 'scoped memory for tpu_custom_call.1']
    #allocation10 [shape = 'u8[131072]{0}', space=vmem, size = 0x20000, scoped, tag = 'output window, operand 2']
    %11 = vsyncpa [#allocation3], 0
    %s12 = scalar_lea.sflag [#allocation3], 1
    %13 = vsyncpa %s12, 0
    %14 = vsyncpa [#allocation6], 0
    %15 = vsyncpa [#allocation4], 0
    %s16 = scalar_lea.sflag [#allocation4], 1
    %17 = vsyncpa %s16, 0
    %18 = vsyncpa [#allocation9], 0
    %s19 = scalar_lea.sflag [#allocation9], 1
    %20 = vsyncpa %s19, 0
    loop: start=0, step=1, limit=6
    $region2: #{tpu_custom_call.1} parent=1 // loop_pre_header
      _
    $region3: #{tpu_custom_call.1} parent=1 // loop_header
      %s22 = sphi 0, %s26
      %p23 = scmp.ge.s32.totalorder %s22, 6
      %s29 = sphi 0, %s41
      %s30 = sphi 0, %s37
      %s31 = sphi 0, %s29
      %s32 = sphi 0, %s30
      %s33 = sphi 0, %s31
      %s34 = sphi 0, %s32
      %s46 = sphi 0, %s48
      %s49 = sphi 0, %s46
      %s50 = sphi 0, %s49
      %s66 = sphi 0, %s50
      %s70 = sphi 0, %s70
      %s72 = sphi 0, %s70
      %s73 = sphi 0, %s72
      %s87 = sphi 0, %s73
      %s91 = sphi 0, %s91
      %s93 = sphi 0, %s91
      %s94 = sphi 0, %s93
      %s108 = sphi 0, %s94
      %s116 = sphi 0, %s118
      %s119 = sphi 0, %s116
      %s120 = sphi 0, %s119
      %s136 = sphi 0, %s120
      %s144 = sphi 0, %s146
      %s147 = sphi 0, %s144
      %s148 = sphi 0, %s147
      %s164 = sphi 0, %s148
      %s172 = sphi 0, %s174
      %s175 = sphi 0, %s172
      %s176 = sphi 0, %s175
      %s192 = sphi 0, %s176
    $region4: #{tpu_custom_call.1} parent=1 // loop_header_branch
      %25 = sbr.rel (%p23) target = $region8
    $region5: #{tpu_custom_call.1} parent=1 // loop_body
      %s27 = ssub.s32 %s22, 1
      %s28 = ssub.s32 %s22, 2
      %s35 = sadd.s32 1, %s30
      %p36 = scmp.ge.s32.totalorder %s35, 2
      %s37 = scalar_select %p36, 0, %s35
      %s38 = sadd.s32 1, %s29
      %s39 = scalar_select %p36, %s38, %s29
      %p40 = scmp.ge.s32.totalorder %s39, 2
      %s41 = scalar_select %p40, 0, %s39
      %s42 = ssub.s32 %s29, %s41
      %s43 = ssub.s32 %s30, %s37
      %s44 = sor.u32 %s42, %s43
      %p45 = scmp.eq.s32.totalorder %s44, 0
      %s47 = sadd.s32 %s46, 1
      %s48 = scalar_select %p45, %s46, %s47
      %p51 = pneg %p45
      %p52 = scmp.eq.s32.totalorder %s22, 3
      %p53 = por %p51, %p52
      %p54 = scmp.ne.s32.totalorder %s46, %s49
      %p55 = scmp.eq.s32.totalorder %s22, 0
      %p56 = por %p54, %p55
      %p57 = scmp.ne.s32.totalorder %s46, %s49
      %p58 = scmp.eq.s32.totalorder %s27, 3
      %p59 = por %p57, %p58
      %p60 = scmp.ne.s32.totalorder %s49, %s50
      %p61 = scmp.eq.s32.totalorder %s27, 0
      %p62 = por %p60, %p61
      %p63 = scmp.ne.s32.totalorder %s49, %s50
      %p64 = scmp.eq.s32.totalorder %s28, 3
      %p65 = por %p63, %p64
      %p67 = scmp.ne.s32.totalorder %s50, %s66
      %p68 = scmp.eq.s32.totalorder %s28, 0
      %p69 = por %p67, %p68
      %s71 = sadd.s32 %s70, 1
      %p74 = scmp.eq.s32.totalorder %s22, 3
      %p75 = scmp.ne.s32.totalorder %s70, %s72
      %p76 = scmp.eq.s32.totalorder %s22, 0
      %p77 = por %p75, %p76
      %p78 = scmp.ne.s32.totalorder %s70, %s72
      %p79 = scmp.eq.s32.totalorder %s27, 3
      %p80 = por %p78, %p79
      %p81 = scmp.ne.s32.totalorder %s72, %s73
      %p82 = scmp.eq.s32.totalorder %s27, 0
      %p83 = por %p81, %p82
      %p84 = scmp.ne.s32.totalorder %s72, %s73
      %p85 = scmp.eq.s32.totalorder %s28, 3
      %p86 = por %p84, %p85
      %p88 = scmp.ne.s32.totalorder %s73, %s87
      %p89 = scmp.eq.s32.totalorder %s28, 0
      %p90 = por %p88, %p89
      %s92 = sadd.s32 %s91, 1
      %p95 = scmp.eq.s32.totalorder %s22, 3
      %p96 = scmp.ne.s32.totalorder %s91, %s93
      %p97 = scmp.eq.s32.totalorder %s22, 0
      %p98 = por %p96, %p97
      %p99 = scmp.ne.s32.totalorder %s91, %s93
      %p100 = scmp.eq.s32.totalorder %s27, 3
      %p101 = por %p99, %p100
      %p102 = scmp.ne.s32.totalorder %s93, %s94
      %p103 = scmp.eq.s32.totalorder %s27, 0
      %p104 = por %p102, %p103
      %p105 = scmp.ne.s32.totalorder %s93, %s94
      %p106 = scmp.eq.s32.totalorder %s28, 3
      %p107 = por %p105, %p106
      %p109 = scmp.ne.s32.totalorder %s94, %s108
      %p110 = scmp.eq.s32.totalorder %s28, 0
      %p111 = por %p109, %p110
      %s112 = ssub.s32 %s29, %s41
      %s113 = ssub.s32 %s30, %s37
      %s114 = sor.u32 %s112, %s113
      %p115 = scmp.eq.s32.totalorder %s114, 0
      %s117 = sadd.s32 %s116, 1
      %s118 = scalar_select %p115, %s116, %s117
      %p121 = pneg %p115
      %p122 = scmp.eq.s32.totalorder %s22, 3
      %p123 = por %p121, %p122
      %p124 = scmp.ne.s32.totalorder %s116, %s119
      %p125 = scmp.eq.s32.totalorder %s22, 0
      %p126 = por %p124, %p125
      %p127 = scmp.ne.s32.totalorder %s116, %s119
      %p128 = scmp.eq.s32.totalorder %s27, 3
      %p129 = por %p127, %p128
      %p130 = scmp.ne.s32.totalorder %s119, %s120
      %p131 = scmp.eq.s32.totalorder %s27, 0
      %p132 = por %p130, %p131
      %p133 = scmp.ne.s32.totalorder %s119, %s120
      %p134 = scmp.eq.s32.totalorder %s28, 3
      %p135 = por %p133, %p134
      %p137 = scmp.ne.s32.totalorder %s120, %s136
      %p138 = scmp.eq.s32.totalorder %s28, 0
      %p139 = por %p137, %p138
      %s140 = ssub.s32 %s29, %s41
      %s141 = ssub.s32 %s30, %s37
      %s142 = sor.u32 %s140, %s141
      %p143 = scmp.eq.s32.totalorder %s142, 0
      %s145 = sadd.s32 %s144, 1
      %s146 = scalar_select %p143, %s144, %s145
      %p149 = pneg %p143
      %p150 = scmp.eq.s32.totalorder %s22, 3
      %p151 = por %p149, %p150
      %p152 = scmp.ne.s32.totalorder %s144, %s147
      %p153 = scmp.eq.s32.totalorder %s22, 0
      %p154 = por %p152, %p153
      %p155 = scmp.ne.s32.totalorder %s144, %s147
      %p156 = scmp.eq.s32.totalorder %s27, 3
      %p157 = por %p155, %p156
      %p158 = scmp.ne.s32.totalorder %s147, %s148
      %p159 = scmp.eq.s32.totalorder %s27, 0
      %p160 = por %p158, %p159
      %p161 = scmp.ne.s32.totalorder %s147, %s148
      %p162 = scmp.eq.s32.totalorder %s28, 3
      %p163 = por %p161, %p162
      %p165 = scmp.ne.s32.totalorder %s148, %s164
      %p166 = scmp.eq.s32.totalorder %s28, 0
      %p167 = por %p165, %p166
      %s168 = ssub.s32 %s29, %s41
      %s169 = ssub.s32 %s30, %s37
      %s170 = sor.u32 %s168, %s169
      %p171 = scmp.eq.s32.totalorder %s170, 0
      %s173 = sadd.s32 %s172, 1
      %s174 = scalar_select %p171, %s172, %s173
      %p177 = pneg %p171
      %p178 = scmp.eq.s32.totalorder %s22, 3
      %p179 = por %p177, %p178
      %p180 = scmp.ne.s32.totalorder %s172, %s175
      %p181 = scmp.eq.s32.totalorder %s22, 0
      %p182 = por %p180, %p181
      %p183 = scmp.ne.s32.totalorder %s172, %s175
      %p184 = scmp.eq.s32.totalorder %s27, 3
      %p185 = por %p183, %p184
      %p186 = scmp.ne.s32.totalorder %s175, %s176
      %p187 = scmp.eq.s32.totalorder %s27, 0
      %p188 = por %p186, %p187
      %p189 = scmp.ne.s32.totalorder %s175, %s176
      %p190 = scmp.eq.s32.totalorder %s28, 3
      %p191 = por %p189, %p190
      %p193 = scmp.ne.s32.totalorder %s176, %s192
      %p194 = scmp.eq.s32.totalorder %s28, 0
      %p195 = por %p193, %p194
      %p196 = scmp.le.s32.totalorder 1, %s22
      %p197 = scmp.lt.s32.totalorder %s22, 5
      %p198 = pnand %p196, %p197
      %p199 = pneg %p198
      // Predicated region
      $region9: #{tpu_custom_call.1} parent=5 // pred_check
        _
      $region10: #{tpu_custom_call.1} parent=5 // pred_check_branch
        %201 = sbr.rel (%p198) target = $region12
      $region11: #{tpu_custom_call.1} parent=5 // pred_region
        %s202 = ssub.s32 %s22, 1
        // Predicated region
        $region13: #{tpu_custom_call.1} parent=11 // pred_check
          %p203 = pneg %p83
        $region14: #{tpu_custom_call.1} parent=11 // pred_check_branch
          %205 = sbr.rel (%p203) target = $region16
        $region15: #{tpu_custom_call.1} parent=11 // pred_region
          %s207 = ssub.s32 3072, 3072
          %208 = vsyncadd [#allocation6], %s207
          %s209 = sshll.u32 [#allocation5], 4
          %s210 = int_to_ptr.vmem [resolvable:$true] %s209
          %215 = dma.hbm_to_vmem [thread:$0]  %s1, 3072, %s210, [#allocation6], 192, 192, 12
        $region16: #{tpu_custom_call.1} parent=11 // pred_fallthru
          _
        // Predicated region
        $region17: #{tpu_custom_call.1} parent=11 // pred_check
          %p216 = pneg %p104
        $region18: #{tpu_custom_call.1} parent=11 // pred_check_branch
          %218 = sbr.rel (%p216) target = $region20
        $region19: #{tpu_custom_call.1} parent=11 // pred_region
          _
        $region20: #{tpu_custom_call.1} parent=11 // pred_fallthru
          _
      $region12: #{tpu_custom_call.1} parent=5 // pred_fallthru
        _
      %p219 = scmp.lt.s32.totalorder %s22, 4
      // Predicated region
      $region21: #{tpu_custom_call.1} parent=5 // pred_check
        %p220 = pneg %p219
      $region22: #{tpu_custom_call.1} parent=5 // pred_check_branch
        %222 = sbr.rel (%p220) target = $region24
      $region23: #{tpu_custom_call.1} parent=5 // pred_region
        // Predicated region
        $region25: #{tpu_custom_call.1} parent=23 // pred_check
          %p223 = pneg %p56
        $region26: #{tpu_custom_call.1} parent=23 // pred_check_branch
          %225 = sbr.rel (%p223) target = $region28
        $region27: #{tpu_custom_call.1} parent=23 // pred_region
          %s226 = sand.u32 %s46, 1
          %s227 = scalar_lea.sflag [#allocation3], %s226
          %s228 = sand.u32 %s46, 1
          %s229 = smul.addr %s228, 256
          %s230 = scalar_lea.vmem [#allocation2], %s229
          %s231 = smul.u32 32, %s30
          %s233 = ssub.s32 4096, 4096
          %234 = vsyncadd %s227, %s233
          %s235 = smul.addr %s29, 64
          %s236 = sadd.s32 %s231, %s235
          %s237 = smul.addr %s236, 128
          %s238 = scalar_lea.hbm %s0, %s237
          %s239 = sshll.u32 %s230, 4
          %s240 = int_to_ptr.vmem [resolvable:$true] %s239
          %245 = dma.hbm_to_vmem [thread:$0]  %s238, 4096, %s240, %s227, 128, 128, 8
        $region28: #{tpu_custom_call.1} parent=23 // pred_fallthru
          _
      $region24: #{tpu_custom_call.1} parent=5 // pred_fallthru
        _
      %p246 = scmp.le.s32.totalorder 1, %s22
      %p247 = scmp.lt.s32.totalorder %s22, 5
      %p248 = pnand %p246, %p247
      %p249 = pneg %p248
      // Predicated region
      $region29: #{tpu_custom_call.1} parent=5 // pred_check
        _
      $region30: #{tpu_custom_call.1} parent=5 // pred_check_branch
        %251 = sbr.rel (%p248) target = $region32
      $region31: #{tpu_custom_call.1} parent=5 // pred_region
        %s252 = ssub.s32 %s22, 1
        %s253 = sand.u32 %s49, 1
        %s254 = scalar_lea.sflag [#allocation3], %s253
        %s255 = sand.u32 %s49, 1
        %s256 = smul.addr %s255, 256
        %s257 = scalar_lea.vmem [#allocation2], %s256
        // Predicated region
        $region33: #{tpu_custom_call.1} parent=31 // pred_check
          %p258 = pneg %p62
        $region34: #{tpu_custom_call.1} parent=31 // pred_check_branch
          %260 = sbr.rel (%p258) target = $region36
        $region35: #{tpu_custom_call.1} parent=31 // pred_region
          %261 = dma.done %s254, 4096
        $region36: #{tpu_custom_call.1} parent=31 // pred_fallthru
          _
        // Predicated region
        $region37: #{tpu_custom_call.1} parent=31 // pred_check
          %p262 = pneg %p83
        $region38: #{tpu_custom_call.1} parent=31 // pred_check_branch
          %264 = sbr.rel (%p262) target = $region40
        $region39: #{tpu_custom_call.1} parent=31 // pred_region
          %265 = dma.done [#allocation6], 3072
        $region40: #{tpu_custom_call.1} parent=31 // pred_fallthru
          _
        %s266 = sand.u32 %s49, 1
        %s267 = scalar_lea.sflag [#allocation3], %s266
        %s268 = sand.u32 %s49, 1
        %s269 = smul.addr %s268, 256
        %s270 = scalar_lea.vmem [#allocation2], %s269
        %p271 = pneg %p62
        %p272 = pneg %p59
        %p273 = pneg %p83
        %p274 = pneg %p80
        %p275 = pneg %p104
        %p276 = pneg %p101
        %p277 = pneg %p132
        %p278 = pneg %p129
        %s279 = sand.u32 %s119, 1
        %s280 = scalar_lea.sflag [#allocation4], %s279
        %s281 = sand.u32 %s119, 1
        %s282 = smul.addr %s281, 128
        %s283 = scalar_lea.vmem [#allocation7], %s282
        %p284 = pneg %p160
        %p285 = pneg %p157
        %s286 = sand.u32 %s27, 1
        %s287 = scalar_lea.sflag [#allocation9], %s286
        %s288 = sand.u32 %s147, 1
        %s289 = smul.addr %s288, 128
        %s290 = scalar_lea.vmem [#allocation8], %s289
        %p291 = pneg %p188
        %p292 = pneg %p185
        %s293 = sand.u32 %s27, 1
        %s294 = scalar_lea.sflag [#allocation9], %s293
        %s295 = sand.u32 %s175, 1
        %s296 = smul.addr %s295, 128
        %s297 = scalar_lea.vmem [#allocation10], %s296
        %s298 = smul.u32 32, %s32
        %s299 = smul.u32 32, %s32
        %s300 = smul.u32 32, %s32
        %s301 = smul.u32 32, %s32
        %v303 = vld [vmem:[%s257] sm:$0xff]
        %v304 = vld [vmem:[%s257 + $0x8] sm:$0xff]
        %v305 = vld [vmem:[%s257 + $0x10] sm:$0xff]
        %v306 = vld [vmem:[%s257 + $0x18] sm:$0xff]
        %v307 = vld [vmem:[%s257 + $0x20] sm:$0xff]
        %v308 = vld [vmem:[%s257 + $0x28] sm:$0xff]
        %v309 = vld [vmem:[%s257 + $0x30] sm:$0xff]
        %v310 = vld [vmem:[%s257 + $0x38] sm:$0xff]
        %v311 = vld [vmem:[%s257 + $0x40] sm:$0xff]
        %v312 = vld [vmem:[%s257 + $0x48] sm:$0xff]
        %v313 = vld [vmem:[%s257 + $0x50] sm:$0xff]
        %v314 = vld [vmem:[%s257 + $0x58] sm:$0xff]
        %v315 = vld [vmem:[%s257 + $0x60] sm:$0xff]
        %v316 = vld [vmem:[%s257 + $0x68] sm:$0xff]
        %v317 = vld [vmem:[%s257 + $0x70] sm:$0xff]
        %v318 = vld [vmem:[%s257 + $0x78] sm:$0xff]
        %v319 = vld [vmem:[%s257 + $0x80] sm:$0xff]
        %v320 = vld [vmem:[%s257 + $0x88] sm:$0xff]
        %v321 = vld [vmem:[%s257 + $0x90] sm:$0xff]
        %v322 = vld [vmem:[%s257 + $0x98] sm:$0xff]
        %v323 = vld [vmem:[%s257 + $0xa0] sm:$0xff]
        %v324 = vld [vmem:[%s257 + $0xa8] sm:$0xff]
        %v325 = vld [vmem:[%s257 + $0xb0] sm:$0xff]
        %v326 = vld [vmem:[%s257 + $0xb8] sm:$0xff]
        %v327 = vld [vmem:[%s257 + $0xc0] sm:$0xff]
        %v328 = vld [vmem:[%s257 + $0xc8] sm:$0xff]
        %v329 = vld [vmem:[%s257 + $0xd0] sm:$0xff]
        %v330 = vld [vmem:[%s257 + $0xd8] sm:$0xff]
        %v331 = vld [vmem:[%s257 + $0xe0] sm:$0xff]
        %v332 = vld [vmem:[%s257 + $0xe8] sm:$0xff]
        %v333 = vld [vmem:[%s257 + $0xf0] sm:$0xff]
        %v334 = vld [vmem:[%s257 + $0xf8] sm:$0xff]
        %v335 = vpack.c.bf16 %v304, %v303
        %v336 = vpack.c.bf16 %v306, %v305
        %v337 = vpack.c.bf16 %v308, %v307
        %v338 = vpack.c.bf16 %v310, %v309
        %v339 = vpack.c.bf16 %v312, %v311
        %v340 = vpack.c.bf16 %v314, %v313
        %v341 = vpack.c.bf16 %v316, %v315
        %v342 = vpack.c.bf16 %v318, %v317
        %v343 = vpack.c.bf16 %v320, %v319
        %v344 = vpack.c.bf16 %v322, %v321
        %v345 = vpack.c.bf16 %v324, %v323
        %v346 = vpack.c.bf16 %v326, %v325
        %v347 = vpack.c.bf16 %v328, %v327
        %v348 = vpack.c.bf16 %v330, %v329
        %v349 = vpack.c.bf16 %v332, %v331
        %v350 = vpack.c.bf16 %v334, %v333
        %v351 = vld [vmem:[#allocation5] sm:$0xff]
        %v352 = vld [vmem:[#allocation5 + $0x8] sm:$0xf]
        %v353 = vld [vmem:[#allocation5 + $0xc] sm:$0xff]
        %v354 = vld [vmem:[#allocation5 + $0x14] sm:$0xf]
        %v355 = vld [vmem:[#allocation5 + $0x18] sm:$0xff]
        %v356 = vld [vmem:[#allocation5 + $0x20] sm:$0xf]
        %v357 = vld [vmem:[#allocation5 + $0x24] sm:$0xff]
        %v358 = vld [vmem:[#allocation5 + $0x2c] sm:$0xf]
        %v359 = vld [vmem:[#allocation5 + $0x30] sm:$0xff]
        %v360 = vld [vmem:[#allocation5 + $0x38] sm:$0xf]
        %v361 = vld [vmem:[#allocation5 + $0x3c] sm:$0xff]
        %v362 = vld [vmem:[#allocation5 + $0x44] sm:$0xf]
        %v363 = vld [vmem:[#allocation5 + $0x48] sm:$0xff]
        %v364 = vld [vmem:[#allocation5 + $0x50] sm:$0xf]
        %v365 = vld [vmem:[#allocation5 + $0x54] sm:$0xff]
        %v366 = vld [vmem:[#allocation5 + $0x5c] sm:$0xf]
        %v367 = vld [vmem:[#allocation5 + $0x60] sm:$0xff]
        %v368 = vld [vmem:[#allocation5 + $0x68] sm:$0xf]
        %v369 = vld [vmem:[#allocation5 + $0x6c] sm:$0xff]
        %v370 = vld [vmem:[#allocation5 + $0x74] sm:$0xf]
        %v371 = vld [vmem:[#allocation5 + $0x78] sm:$0xff]
        %v372 = vld [vmem:[#allocation5 + $0x80] sm:$0xf]
        %v373 = vld [vmem:[#allocation5 + $0x84] sm:$0xff]
        %v374 = vld [vmem:[#allocation5 + $0x8c] sm:$0xf]
        %v375 = vld [vmem:[#allocation5 + $0x90] sm:$0xff]
        %v376 = vld [vmem:[#allocation5 + $0x98] sm:$0xf]
        %v377 = vld [vmem:[#allocation5 + $0x9c] sm:$0xff]
        %v378 = vld [vmem:[#allocation5 + $0xa4] sm:$0xf]
        %v379 = vld [vmem:[#allocation5 + $0xa8] sm:$0xff]
        %v380 = vld [vmem:[#allocation5 + $0xb0] sm:$0xf]
        %v381 = vld [vmem:[#allocation5 + $0xb4] sm:$0xff]
        %v382 = vld [vmem:[#allocation5 + $0xbc] sm:$0xf]
        %v383 = vld [vmem:[%s2] sm:$0x7]
        %v385 = vlaneseq
        %v386 = vshrl.u32 %v385, 7
        %v387 = vsub.s32 0, %v386
        %v388 = vrot.slane %v383, %v387
        %v389 = vlaneseq
        %v390 = vshrl.u32 %v389, 7
        %v391 = vsub.s32 1, %v390
        %v392 = vrot.slane %v383, %v391
        %v393 = vlaneseq
        %v394 = vshrl.u32 %v393, 7
        %v395 = vsub.s32 2, %v394
        %v396 = vrot.slane %v383, %v395
        %v432 = vunpack.c.l.b16 %v351
        %v433 = vunpack.c.h.b16 %v351
        %v434 = vunpack.c.l.b16 %v352
        %v435 = vunpack.c.l.b16 %v353
        %v436 = vunpack.c.h.b16 %v353
        %v437 = vunpack.c.l.b16 %v354
        %v438 = vunpack.c.l.b16 %v355
        %v439 = vunpack.c.h.b16 %v355
        %v440 = vunpack.c.l.b16 %v356
        %v441 = vunpack.c.l.b16 %v357
        %v442 = vunpack.c.h.b16 %v357
        %v443 = vunpack.c.l.b16 %v358
        %v444 = vunpack.c.l.b16 %v359
        %v445 = vunpack.c.h.b16 %v359
        %v446 = vunpack.c.l.b16 %v360
        %v447 = vunpack.c.l.b16 %v361
        %v448 = vunpack.c.h.b16 %v361
        %v449 = vunpack.c.l.b16 %v362
        %v450 = vunpack.c.l.b16 %v363
        %v451 = vunpack.c.h.b16 %v363
        %v452 = vunpack.c.l.b16 %v364
        %v453 = vunpack.c.l.b16 %v365
        %v454 = vunpack.c.h.b16 %v365
        %v455 = vunpack.c.l.b16 %v366
        %v456 = vunpack.c.l.b16 %v367
        %v457 = vunpack.c.h.b16 %v367
        %v458 = vunpack.c.l.b16 %v368
        %v459 = vunpack.c.l.b16 %v369
        %v460 = vunpack.c.h.b16 %v369
        %v461 = vunpack.c.l.b16 %v370
        %v462 = vunpack.c.l.b16 %v371
        %v463 = vunpack.c.h.b16 %v371
        %v464 = vunpack.c.l.b16 %v372
        %v465 = vunpack.c.l.b16 %v373
        %v466 = vunpack.c.h.b16 %v373
        %v467 = vunpack.c.l.b16 %v374
        %v468 = vunpack.c.l.b16 %v375
        %v469 = vunpack.c.h.b16 %v375
        %v470 = vunpack.c.l.b16 %v376
        %v471 = vunpack.c.l.b16 %v377
        %v472 = vunpack.c.h.b16 %v377
        %v473 = vunpack.c.l.b16 %v378
        %v474 = vunpack.c.l.b16 %v379
        %v475 = vunpack.c.h.b16 %v379
        %v476 = vunpack.c.l.b16 %v380
        %v477 = vunpack.c.l.b16 %v381
        %v478 = vunpack.c.h.b16 %v381
        %v479 = vunpack.c.l.b16 %v382
        %v480 = vpack.c.b16 %v435, %v432
        %v481 = vpack.c.b16 %v436, %v433
        %v482 = vpack.c.b16 %v437, %v434
        %v483 = vpack.c.b16 %v441, %v438
        %v484 = vpack.c.b16 %v442, %v439
        %v485 = vpack.c.b16 %v443, %v440
        %v486 = vpack.c.b16 %v447, %v444
        %v487 = vpack.c.b16 %v448, %v445
        %v488 = vpack.c.b16 %v449, %v446
        %v489 = vpack.c.b16 %v453, %v450
        %v490 = vpack.c.b16 %v454, %v451
        %v491 = vpack.c.b16 %v455, %v452
        %v492 = vpack.c.b16 %v459, %v456
        %v493 = vpack.c.b16 %v460, %v457
        %v494 = vpack.c.b16 %v461, %v458
        %v495 = vpack.c.b16 %v465, %v462
        %v496 = vpack.c.b16 %v466, %v463
        %v497 = vpack.c.b16 %v467, %v464
        %v498 = vpack.c.b16 %v471, %v468
        %v499 = vpack.c.b16 %v472, %v469
        %v500 = vpack.c.b16 %v473, %v470
        %v501 = vpack.c.b16 %v477, %v474
        %v502 = vpack.c.b16 %v478, %v475
        %v503 = vpack.c.b16 %v479, %v476
        %528 = vmatprep.subr.bf16.mxu0 %v481
        %529 = vmatpush1.bf16.msra.mxu0 %v480
        %530 = vmatprep.subr.bf16.mxu0 %v484
        %531 = vmatpush1.bf16.msra.mxu0 %v483
        %532 = vmatprep.subr.bf16.mxu0 %v487
        %533 = vmatpush1.bf16.msra.mxu0 %v486
        %534 = vmatprep.subr.bf16.mxu0 %v490
        %535 = vmatpush1.bf16.msra.mxu0 %v489
        %536 = vmatprep.subr.bf16.mxu0 %v493
        %537 = vmatpush1.bf16.msra.mxu0 %v492
        %538 = vmatprep.subr.bf16.mxu0 %v496
        %539 = vmatpush1.bf16.msra.mxu0 %v495
        %540 = vmatprep.subr.bf16.mxu0 %v499
        %541 = vmatpush1.bf16.msra.mxu0 %v498
        %542 = vmatprep.subr.bf16.mxu0 %v502
        %543 = vmatpush1.bf16.msra.mxu0 %v501
        %544 = vmatprep.subr.bf16.mxu0 0
        %545 = vmatpush1.bf16.msra.mxu0 0
        %546 = vmatprep.subr.bf16.mxu0 0
        %547 = vmatpush1.bf16.msra.mxu0 0
        %548 = vmatprep.subr.bf16.mxu0 0
        %549 = vmatpush1.bf16.msra.mxu0 0
        %550 = vmatprep.subr.bf16.mxu0 0
        %551 = vmatpush1.bf16.msra.mxu0 0
        %552 = vmatprep.subr.bf16.mxu0 0
        %553 = vmatpush1.bf16.msra.mxu0 0
        %554 = vmatprep.subr.bf16.mxu0 0
        %555 = vmatpush1.bf16.msra.mxu0 0
        %556 = vmatprep.subr.bf16.mxu0 0
        %557 = vmatpush1.bf16.msra.mxu0 0
        %558 = vmatprep.subr.bf16.mxu0 0
        %559 = vmatpush1.bf16.msra.mxu0 0
        %560 = vmatprep.mubr.bf16.mxu0 0
        %561 = vmatmul.mubr.bf16.gmra.mrb[0].mxu0 %v335
        %v562 = vpop.f32.mrb[0].mxu0
        %v563 = vadd.f32 %v388, %v562
        %v564 = vpop.f32.mrb[0].mxu0
        %v565 = vadd.f32 %v392, %v564
        %v566 = vpop.f32.mrb[0].mxu0
        %v567 = vadd.f32 %v388, %v566
        %v568 = vpop.f32.mrb[0].mxu0
        %v569 = vadd.f32 %v392, %v568
        %570 = vmatprep.mubr.bf16.mxu0 0
        %571 = vmatmul.mubr.bf16.gmra.mrb[0].mxu0 %v336
        %v572 = vpop.f32.mrb[0].mxu0
        %v573 = vadd.f32 %v388, %v572
        %v574 = vpop.f32.mrb[0].mxu0
        %v575 = vadd.f32 %v392, %v574
        %v576 = vpop.f32.mrb[0].mxu0
        %v577 = vadd.f32 %v388, %v576
        %v578 = vpop.f32.mrb[0].mxu0
        %v579 = vadd.f32 %v392, %v578
        %580 = vmatprep.mubr.bf16.mxu0 0
        %581 = vmatmul.mubr.bf16.gmra.mrb[0].mxu0 %v337
        %v582 = vpop.f32.mrb[0].mxu0
        %v583 = vadd.f32 %v388, %v582
        %v584 = vpop.f32.mrb[0].mxu0
        %v585 = vadd.f32 %v392, %v584
        %v586 = vpop.f32.mrb[0].mxu0
        %v587 = vadd.f32 %v388, %v586
        %v588 = vpop.f32.mrb[0].mxu0
        %v589 = vadd.f32 %v392, %v588
        %590 = vmatprep.mubr.bf16.mxu0 0
        %591 = vmatmul.mubr.bf16.gmra.mrb[0].mxu0 %v338
        %v592 = vpop.f32.mrb[0].mxu0
        %v593 = vadd.f32 %v388, %v592
        %v594 = vpop.f32.mrb[0].mxu0
        %v595 = vadd.f32 %v392, %v594
        %v596 = vpop.f32.mrb[0].mxu0
        %v597 = vadd.f32 %v388, %v596
        %v598 = vpop.f32.mrb[0].mxu0
        %v599 = vadd.f32 %v392, %v598
        %600 = vmatprep.mubr.bf16.mxu0 0
        %601 = vmatmul.mubr.bf16.gmra.mrb[0].mxu0 %v339
        %v602 = vpop.f32.mrb[0].mxu0
        %v603 = vadd.f32 %v388, %v602
        %v604 = vpop.f32.mrb[0].mxu0
        %v605 = vadd.f32 %v392, %v604
        %v606 = vpop.f32.mrb[0].mxu0
        %v607 = vadd.f32 %v388, %v606
        %v608 = vpop.f32.mrb[0].mxu0
        %v609 = vadd.f32 %v392, %v608
        %610 = vmatprep.mubr.bf16.mxu0 0
        %611 = vmatmul.mubr.bf16.gmra.mrb[0].mxu0 %v340
        %v612 = vpop.f32.mrb[0].mxu0
        %v613 = vadd.f32 %v388, %v612
        %v614 = vpop.f32.mrb[0].mxu0
        %v615 = vadd.f32 %v392, %v614
        %v616 = vpop.f32.mrb[0].mxu0
        %v617 = vadd.f32 %v388, %v616
        %v618 = vpop.f32.mrb[0].mxu0
        %v619 = vadd.f32 %v392, %v618
        %620 = vmatprep.mubr.bf16.mxu0 0
        %621 = vmatmul.mubr.bf16.gmra.mrb[0].mxu0 %v341
        %v622 = vpop.f32.mrb[0].mxu0
        %v623 = vadd.f32 %v388, %v622
        %v624 = vpop.f32.mrb[0].mxu0
        %v625 = vadd.f32 %v392, %v624
        %v626 = vpop.f32.mrb[0].mxu0
        %v627 = vadd.f32 %v388, %v626
        %v628 = vpop.f32.mrb[0].mxu0
        %v629 = vadd.f32 %v392, %v628
        %630 = vmatprep.mubr.bf16.mxu0 0
        %631 = vmatmul.mubr.bf16.gmra.mrb[0].mxu0 %v342
        %v632 = vpop.f32.mrb[0].mxu0
        %v633 = vadd.f32 %v388, %v632
        %v634 = vpop.f32.mrb[0].mxu0
        %v635 = vadd.f32 %v392, %v634
        %v636 = vpop.f32.mrb[0].mxu0
        %v637 = vadd.f32 %v388, %v636
        %v638 = vpop.f32.mrb[0].mxu0
        %v639 = vadd.f32 %v392, %v638
        %640 = vmatprep.mubr.bf16.mxu0 0
        %641 = vmatmul.mubr.bf16.gmra.mrb[0].mxu0 %v343
        %v642 = vpop.f32.mrb[0].mxu0
        %v643 = vadd.f32 %v388, %v642
        %v644 = vpop.f32.mrb[0].mxu0
        %v645 = vadd.f32 %v392, %v644
        %v646 = vpop.f32.mrb[0].mxu0
        %v647 = vadd.f32 %v388, %v646
        %v648 = vpop.f32.mrb[0].mxu0
        %v649 = vadd.f32 %v392, %v648
        %650 = vmatprep.mubr.bf16.mxu0 0
        %651 = vmatmul.mubr.bf16.gmra.mrb[0].mxu0 %v344
        %v652 = vpop.f32.mrb[0].mxu0
        %v653 = vadd.f32 %v388, %v652
        %v654 = vpop.f32.mrb[0].mxu0
        %v655 = vadd.f32 %v392, %v654
        %v656 = vpop.f32.mrb[0].mxu0
        %v657 = vadd.f32 %v388, %v656
        %v658 = vpop.f32.mrb[0].mxu0
        %v659 = vadd.f32 %v392, %v658
        %660 = vmatprep.mubr.bf16.mxu0 0
        %661 = vmatmul.mubr.bf16.gmra.mrb[0].mxu0 %v345
        %v662 = vpop.f32.mrb[0].mxu0
        %v663 = vadd.f32 %v388, %v662
        %v664 = vpop.f32.mrb[0].mxu0
        %v665 = vadd.f32 %v392, %v664
        %v666 = vpop.f32.mrb[0].mxu0
        %v667 = vadd.f32 %v388, %v666
        %v668 = vpop.f32.mrb[0].mxu0
        %v669 = vadd.f32 %v392, %v668
        %670 = vmatprep.mubr.bf16.mxu0 0
        %671 = vmatmul.mubr.bf16.gmra.mrb[0].mxu0 %v346
        %v672 = vpop.f32.mrb[0].mxu0
        %v673 = vadd.f32 %v388, %v672
        %v674 = vpop.f32.mrb[0].mxu0
        %v675 = vadd.f32 %v392, %v674
        %v676 = vpop.f32.mrb[0].mxu0
        %v677 = vadd.f32 %v388, %v676
        %v678 = vpop.f32.mrb[0].mxu0
        %v679 = vadd.f32 %v392, %v678
        %680 = vmatprep.mubr.bf16.mxu0 0
        %681 = vmatmul.mubr.bf16.gmra.mrb[0].mxu0 %v347
        %v682 = vpop.f32.mrb[0].mxu0
        %v683 = vadd.f32 %v388, %v682
        %v684 = vpop.f32.mrb[0].mxu0
        %v685 = vadd.f32 %v392, %v684
        %v686 = vpop.f32.mrb[0].mxu0
        %v687 = vadd.f32 %v388, %v686
        %v688 = vpop.f32.mrb[0].mxu0
        %v689 = vadd.f32 %v392, %v688
        %690 = vmatprep.mubr.bf16.mxu0 0
        %691 = vmatmul.mubr.bf16.gmra.mrb[0].mxu0 %v348
        %v692 = vpop.f32.mrb[0].mxu0
        %v693 = vadd.f32 %v388, %v692
        %v694 = vpop.f32.mrb[0].mxu0
        %v695 = vadd.f32 %v392, %v694
        %v696 = vpop.f32.mrb[0].mxu0
        %v697 = vadd.f32 %v388, %v696
        %v698 = vpop.f32.mrb[0].mxu0
        %v699 = vadd.f32 %v392, %v698
        %700 = vmatprep.mubr.bf16.mxu0 0
        %701 = vmatmul.mubr.bf16.gmra.mrb[0].mxu0 %v349
        %v702 = vpop.f32.mrb[0].mxu0
        %v703 = vadd.f32 %v388, %v702
        %v704 = vpop.f32.mrb[0].mxu0
        %v705 = vadd.f32 %v392, %v704
        %v706 = vpop.f32.mrb[0].mxu0
        %v707 = vadd.f32 %v388, %v706
        %v708 = vpop.f32.mrb[0].mxu0
        %v709 = vadd.f32 %v392, %v708
        %710 = vmatprep.mubr.bf16.mxu0 0
        %711 = vmatmul.mubr.bf16.gmra.mrb[0].mxu0 %v350
        %v712 = vpop.f32.mrb[0].mxu0
        %v713 = vadd.f32 %v388, %v712
        %v714 = vpop.f32.mrb[0].mxu0
        %v715 = vadd.f32 %v392, %v714
        %v716 = vpop.f32.mrb[0].mxu0
        %v717 = vadd.f32 %v388, %v716
        %v718 = vpop.f32.mrb[0].mxu0
        %v719 = vadd.f32 %v392, %v718
        %720 = vdwg.mxu0
        %721 = vmatprep.subr.bf16.mxu0 0
        %722 = vmatpush1.bf16.msra.mxu0 %v482
        %723 = vmatprep.subr.bf16.mxu0 0
        %724 = vmatpush1.bf16.msra.mxu0 %v485
        %725 = vmatprep.subr.bf16.mxu0 0
        %726 = vmatpush1.bf16.msra.mxu0 %v488
        %727 = vmatprep.subr.bf16.mxu0 0
        %728 = vmatpush1.bf16.msra.mxu0 %v491
        %729 = vmatprep.subr.bf16.mxu0 0
        %730 = vmatpush1.bf16.msra.mxu0 %v494
        %731 = vmatprep.subr.bf16.mxu0 0
        %732 = vmatpush1.bf16.msra.mxu0 %v497
        %733 = vmatprep.subr.bf16.mxu0 0
        %734 = vmatpush1.bf16.msra.mxu0 %v500
        %735 = vmatprep.subr.bf16.mxu0 0
        %736 = vmatpush1.bf16.msra.mxu0 %v503
        %737 = vmatprep.subr.bf16.mxu0 0
        %738 = vmatpush1.bf16.msra.mxu0 0
        %739 = vmatprep.subr.bf16.mxu0 0
        %740 = vmatpush1.bf16.msra.mxu0 0
        %741 = vmatprep.subr.bf16.mxu0 0
        %742 = vmatpush1.bf16.msra.mxu0 0
        %743 = vmatprep.subr.bf16.mxu0 0
        %744 = vmatpush1.bf16.msra.mxu0 0
        %745 = vmatprep.subr.bf16.mxu0 0
        %746 = vmatpush1.bf16.msra.mxu0 0
        %747 = vmatprep.subr.bf16.mxu0 0
        %748 = vmatpush1.bf16.msra.mxu0 0
        %749 = vmatprep.subr.bf16.mxu0 0
        %750 = vmatpush1.bf16.msra.mxu0 0
        %751 = vmatprep.subr.bf16.mxu0 0
        %752 = vmatpush1.bf16.msra.mxu0 0
        %753 = vmatprep.mubr.bf16.mxu0 0
        %754 = vmatmul.mubr.bf16.gmra.mrb[0].mxu0 %v335
        %v755 = vpop.f32.mrb[0].mxu0
        %v756 = vadd.f32 %v396, %v755
        %v757 = vpop.f32.mrb[0].mxu0
        %v758 = vpop.f32.mrb[0].mxu0
        %v759 = vadd.f32 %v396, %v758
        %v760 = vpop.f32.mrb[0].mxu0
        %761 = vmatprep.mubr.bf16.mxu0 0
        %762 = vmatmul.mubr.bf16.gmra.mrb[0].mxu0 %v336
        %v763 = vpop.f32.mrb[0].mxu0
        %v764 = vadd.f32 %v396, %v763
        %v765 = vpop.f32.mrb[0].mxu0
        %v766 = vpop.f32.mrb[0].mxu0
        %v767 = vadd.f32 %v396, %v766
        %v768 = vpop.f32.mrb[0].mxu0
        %769 = vmatprep.mubr.bf16.mxu0 0
        %770 = vmatmul.mubr.bf16.gmra.mrb[0].mxu0 %v337
        %v771 = vpop.f32.mrb[0].mxu0
        %v772 = vadd.f32 %v396, %v771
        %v773 = vpop.f32.mrb[0].mxu0
        %v774 = vpop.f32.mrb[0].mxu0
        %v775 = vadd.f32 %v396, %v774
        %v776 = vpop.f32.mrb[0].mxu0
        %777 = vmatprep.mubr.bf16.mxu0 0
        %778 = vmatmul.mubr.bf16.gmra.mrb[0].mxu0 %v338
        %v779 = vpop.f32.mrb[0].mxu0
        %v780 = vadd.f32 %v396, %v779
        %v781 = vpop.f32.mrb[0].mxu0
        %v782 = vpop.f32.mrb[0].mxu0
        %v783 = vadd.f32 %v396, %v782
        %v784 = vpop.f32.mrb[0].mxu0
        %785 = vmatprep.mubr.bf16.mxu0 0
        %786 = vmatmul.mubr.bf16.gmra.mrb[0].mxu0 %v339
        %v787 = vpop.f32.mrb[0].mxu0
        %v788 = vadd.f32 %v396, %v787
        %v789 = vpop.f32.mrb[0].mxu0
        %v790 = vpop.f32.mrb[0].mxu0
        %v791 = vadd.f32 %v396, %v790
        %v792 = vpop.f32.mrb[0].mxu0
        %793 = vmatprep.mubr.bf16.mxu0 0
        %794 = vmatmul.mubr.bf16.gmra.mrb[0].mxu0 %v340
        %v795 = vpop.f32.mrb[0].mxu0
        %v796 = vadd.f32 %v396, %v795
        %v797 = vpop.f32.mrb[0].mxu0
        %v798 = vpop.f32.mrb[0].mxu0
        %v799 = vadd.f32 %v396, %v798
        %v800 = vpop.f32.mrb[0].mxu0
        %801 = vmatprep.mubr.bf16.mxu0 0
        %802 = vmatmul.mubr.bf16.gmra.mrb[0].mxu0 %v341
        %v803 = vpop.f32.mrb[0].mxu0
        %v804 = vadd.f32 %v396, %v803
        %v805 = vpop.f32.mrb[0].mxu0
        %v806 = vpop.f32.mrb[0].mxu0
        %v807 = vadd.f32 %v396, %v806
        %v808 = vpop.f32.mrb[0].mxu0
        %809 = vmatprep.mubr.bf16.mxu0 0
        %810 = vmatmul.mubr.bf16.gmra.mrb[0].mxu0 %v342
        %v811 = vpop.f32.mrb[0].mxu0
        %v812 = vadd.f32 %v396, %v811
        %v813 = vpop.f32.mrb[0].mxu0
        %v814 = vpop.f32.mrb[0].mxu0
        %v815 = vadd.f32 %v396, %v814
        %v816 = vpop.f32.mrb[0].mxu0
        %817 = vmatprep.mubr.bf16.mxu0 0
        %818 = vmatmul.mubr.bf16.gmra.mrb[0].mxu0 %v343
        %v819 = vpop.f32.mrb[0].mxu0
        %v820 = vadd.f32 %v396, %v819
        %v821 = vpop.f32.mrb[0].mxu0
        %v822 = vpop.f32.mrb[0].mxu0
        %v823 = vadd.f32 %v396, %v822
        %v824 = vpop.f32.mrb[0].mxu0
        %825 = vmatprep.mubr.bf16.mxu0 0
        %826 = vmatmul.mubr.bf16.gmra.mrb[0].mxu0 %v344
        %v827 = vpop.f32.mrb[0].mxu0
        %v828 = vadd.f32 %v396, %v827
        %v829 = vpop.f32.mrb[0].mxu0
        %v830 = vpop.f32.mrb[0].mxu0
        %v831 = vadd.f32 %v396, %v830
        %v832 = vpop.f32.mrb[0].mxu0
        %833 = vmatprep.mubr.bf16.mxu0 0
        %834 = vmatmul.mubr.bf16.gmra.mrb[0].mxu0 %v345
        %v835 = vpop.f32.mrb[0].mxu0
        %v836 = vadd.f32 %v396, %v835
        %v837 = vpop.f32.mrb[0].mxu0
        %v838 = vpop.f32.mrb[0].mxu0
        %v839 = vadd.f32 %v396, %v838
        %v840 = vpop.f32.mrb[0].mxu0
        %841 = vmatprep.mubr.bf16.mxu0 0
        %842 = vmatmul.mubr.bf16.gmra.mrb[0].mxu0 %v346
        %v843 = vpop.f32.mrb[0].mxu0
        %v844 = vadd.f32 %v396, %v843
        %v845 = vpop.f32.mrb[0].mxu0
        %v846 = vpop.f32.mrb[0].mxu0
        %v847 = vadd.f32 %v396, %v846
        %v848 = vpop.f32.mrb[0].mxu0
        %849 = vmatprep.mubr.bf16.mxu0 0
        %850 = vmatmul.mubr.bf16.gmra.mrb[0].mxu0 %v347
        %v851 = vpop.f32.mrb[0].mxu0
        %v852 = vadd.f32 %v396, %v851
        %v853 = vpop.f32.mrb[0].mxu0
        %v854 = vpop.f32.mrb[0].mxu0
        %v855 = vadd.f32 %v396, %v854
        %v856 = vpop.f32.mrb[0].mxu0
        %857 = vmatprep.mubr.bf16.mxu0 0
        %858 = vmatmul.mubr.bf16.gmra.mrb[0].mxu0 %v348
        %v859 = vpop.f32.mrb[0].mxu0
        %v860 = vadd.f32 %v396, %v859
        %v861 = vpop.f32.mrb[0].mxu0
        %v862 = vpop.f32.mrb[0].mxu0
        %v863 = vadd.f32 %v396, %v862
        %v864 = vpop.f32.mrb[0].mxu0
        %865 = vmatprep.mubr.bf16.mxu0 0
        %866 = vmatmul.mubr.bf16.gmra.mrb[0].mxu0 %v349
        %v867 = vpop.f32.mrb[0].mxu0
        %v868 = vadd.f32 %v396, %v867
        %v869 = vpop.f32.mrb[0].mxu0
        %v870 = vpop.f32.mrb[0].mxu0
        %v871 = vadd.f32 %v396, %v870
        %v872 = vpop.f32.mrb[0].mxu0
        %873 = vmatprep.mubr.bf16.mxu0 0
        %874 = vmatmul.mubr.bf16.gmra.mrb[0].mxu0 %v350
        %v875 = vpop.f32.mrb[0].mxu0
        %v876 = vadd.f32 %v396, %v875
        %v877 = vpop.f32.mrb[0].mxu0
        %v878 = vpop.f32.mrb[0].mxu0
        %v879 = vadd.f32 %v396, %v878
        %v880 = vpop.f32.mrb[0].mxu0
        %881 = vdwg.mxu0
        %v882 = vpack.c.bf16 %v567, %v563
        %v883 = vpack.c.bf16 %v577, %v573
        %v884 = vpack.c.bf16 %v587, %v583
        %v885 = vpack.c.bf16 %v597, %v593
        %v886 = vpack.c.bf16 %v607, %v603
        %v887 = vpack.c.bf16 %v617, %v613
        %v888 = vpack.c.bf16 %v627, %v623
        %v889 = vpack.c.bf16 %v637, %v633
        %v890 = vpack.c.bf16 %v647, %v643
        %v891 = vpack.c.bf16 %v657, %v653
        %v892 = vpack.c.bf16 %v667, %v663
        %v893 = vpack.c.bf16 %v677, %v673
        %v894 = vpack.c.bf16 %v687, %v683
        %v895 = vpack.c.bf16 %v697, %v693
        %v896 = vpack.c.bf16 %v707, %v703
        %v897 = vpack.c.bf16 %v717, %v713
        %v914 = vunpack.c.l.b16 %v882
        %v915 = vunpack.c.h.b16 %v882
        %v916 = vunpack.c.l.b16 %v883
        %v917 = vunpack.c.h.b16 %v883
        %v918 = vunpack.c.l.b16 %v884
        %v919 = vunpack.c.h.b16 %v884
        %v920 = vunpack.c.l.b16 %v885
        %v921 = vunpack.c.h.b16 %v885
        %v922 = vunpack.c.l.b16 %v886
        %v923 = vunpack.c.h.b16 %v886
        %v924 = vunpack.c.l.b16 %v887
        %v925 = vunpack.c.h.b16 %v887
        %v926 = vunpack.c.l.b16 %v888
        %v927 = vunpack.c.h.b16 %v888
        %v928 = vunpack.c.l.b16 %v889
        %v929 = vunpack.c.h.b16 %v889
        %v930 = vunpack.c.l.b16 %v890
        %v931 = vunpack.c.h.b16 %v890
        %v932 = vunpack.c.l.b16 %v891
        %v933 = vunpack.c.h.b16 %v891
        %v934 = vunpack.c.l.b16 %v892
        %v935 = vunpack.c.h.b16 %v892
        %v936 = vunpack.c.l.b16 %v893
        %v937 = vunpack.c.h.b16 %v893
        %v938 = vunpack.c.l.b16 %v894
        %v939 = vunpack.c.h.b16 %v894
        %v940 = vunpack.c.l.b16 %v895
        %v941 = vunpack.c.h.b16 %v895
        %v942 = vunpack.c.l.b16 %v896
        %v943 = vunpack.c.h.b16 %v896
        %v944 = vunpack.c.l.b16 %v897
        %v945 = vunpack.c.h.b16 %v897
        %v946 = vpack.c.b16 %v914, %v914
        %v947 = vpack.c.b16 %v915, %v915
        %v948 = vpack.c.b16 %v916, %v916
        %v949 = vpack.c.b16 %v917, %v917
        %v950 = vpack.c.b16 %v918, %v918
        %v951 = vpack.c.b16 %v919, %v919
        %v952 = vpack.c.b16 %v920, %v920
        %v953 = vpack.c.b16 %v921, %v921
        %v954 = vpack.c.b16 %v922, %v922
        %v955 = vpack.c.b16 %v923, %v923
        %v956 = vpack.c.b16 %v924, %v924
        %v957 = vpack.c.b16 %v925, %v925
        %v958 = vpack.c.b16 %v926, %v926
        %v959 = vpack.c.b16 %v927, %v927
        %v960 = vpack.c.b16 %v928, %v928
        %v961 = vpack.c.b16 %v929, %v929
        %v962 = vpack.c.b16 %v930, %v930
        %v963 = vpack.c.b16 %v931, %v931
        %v964 = vpack.c.b16 %v932, %v932
        %v965 = vpack.c.b16 %v933, %v933
        %v966 = vpack.c.b16 %v934, %v934
        %v967 = vpack.c.b16 %v935, %v935
        %v968 = vpack.c.b16 %v936, %v936
        %v969 = vpack.c.b16 %v937, %v937
        %v970 = vpack.c.b16 %v938, %v938
        %v971 = vpack.c.b16 %v939, %v939
        %v972 = vpack.c.b16 %v940, %v940
        %v973 = vpack.c.b16 %v941, %v941
        %v974 = vpack.c.b16 %v942, %v942
        %v975 = vpack.c.b16 %v943, %v943
        %v976 = vpack.c.b16 %v944, %v944
        %v977 = vpack.c.b16 %v945, %v945
        %1010 = vst [vmem:[%s283] sm:$0xf] %v946
        %1011 = vst [vmem:[%s283 + $0x4] sm:$0xf] %v947
        %1012 = vst [vmem:[%s283 + $0x8] sm:$0xf] %v948
        %1013 = vst [vmem:[%s283 + $0xc] sm:$0xf] %v949
        %1014 = vst [vmem:[%s283 + $0x10] sm:$0xf] %v950
        %1015 = vst [vmem:[%s283 + $0x14] sm:$0xf] %v951
        %1016 = vst [vmem:[%s283 + $0x18] sm:$0xf] %v952
        %1017 = vst [vmem:[%s283 + $0x1c] sm:$0xf] %v953
        %1018 = vst [vmem:[%s283 + $0x20] sm:$0xf] %v954
        %1019 = vst [vmem:[%s283 + $0x24] sm:$0xf] %v955
        %1020 = vst [vmem:[%s283 + $0x28] sm:$0xf] %v956
        %1021 = vst [vmem:[%s283 + $0x2c] sm:$0xf] %v957
        %1022 = vst [vmem:[%s283 + $0x30] sm:$0xf] %v958
        %1023 = vst [vmem:[%s283 + $0x34] sm:$0xf] %v959
        %1024 = vst [vmem:[%s283 + $0x38] sm:$0xf] %v960
        %1025 = vst [vmem:[%s283 + $0x3c] sm:$0xf] %v961
        %1026 = vst [vmem:[%s283 + $0x40] sm:$0xf] %v962
        %1027 = vst [vmem:[%s283 + $0x44] sm:$0xf] %v963
        %1028 = vst [vmem:[%s283 + $0x48] sm:$0xf] %v964
        %1029 = vst [vmem:[%s283 + $0x4c] sm:$0xf] %v965
        %1030 = vst [vmem:[%s283 + $0x50] sm:$0xf] %v966
        %1031 = vst [vmem:[%s283 + $0x54] sm:$0xf] %v967
        %1032 = vst [vmem:[%s283 + $0x58] sm:$0xf] %v968
        %1033 = vst [vmem:[%s283 + $0x5c] sm:$0xf] %v969
        %1034 = vst [vmem:[%s283 + $0x60] sm:$0xf] %v970
        %1035 = vst [vmem:[%s283 + $0x64] sm:$0xf] %v971
        %1036 = vst [vmem:[%s283 + $0x68] sm:$0xf] %v972
        %1037 = vst [vmem:[%s283 + $0x6c] sm:$0xf] %v973
        %1038 = vst [vmem:[%s283 + $0x70] sm:$0xf] %v974
        %1039 = vst [vmem:[%s283 + $0x74] sm:$0xf] %v975
        %1040 = vst [vmem:[%s283 + $0x78] sm:$0xf] %v976
        %1041 = vst [vmem:[%s283 + $0x7c] sm:$0xf] %v977
        %v1042 = vpack.c.bf16 %v569, %v565
        %v1043 = vpack.c.bf16 %v579, %v575
        %v1044 = vpack.c.bf16 %v589, %v585
        %v1045 = vpack.c.bf16 %v599, %v595
        %v1046 = vpack.c.bf16 %v609, %v605
        %v1047 = vpack.c.bf16 %v619, %v615
        %v1048 = vpack.c.bf16 %v629, %v625
        %v1049 = vpack.c.bf16 %v639, %v635
        %v1050 = vpack.c.bf16 %v649, %v645
        %v1051 = vpack.c.bf16 %v659, %v655
        %v1052 = vpack.c.bf16 %v669, %v665
        %v1053 = vpack.c.bf16 %v679, %v675
        %v1054 = vpack.c.bf16 %v689, %v685
        %v1055 = vpack.c.bf16 %v699, %v695
        %v1056 = vpack.c.bf16 %v709, %v705
        %v1057 = vpack.c.bf16 %v719, %v715
        %v1074 = vunpack.c.l.b16 %v1042
        %v1075 = vunpack.c.h.b16 %v1042
        %v1076 = vunpack.c.l.b16 %v1043
        %v1077 = vunpack.c.h.b16 %v1043
        %v1078 = vunpack.c.l.b16 %v1044
        %v1079 = vunpack.c.h.b16 %v1044
        %v1080 = vunpack.c.l.b16 %v1045
        %v1081 = vunpack.c.h.b16 %v1045
        %v1082 = vunpack.c.l.b16 %v1046
        %v1083 = vunpack.c.h.b16 %v1046
        %v1084 = vunpack.c.l.b16 %v1047
        %v1085 = vunpack.c.h.b16 %v1047
        %v1086 = vunpack.c.l.b16 %v1048
        %v1087 = vunpack.c.h.b16 %v1048
        %v1088 = vunpack.c.l.b16 %v1049
        %v1089 = vunpack.c.h.b16 %v1049
        %v1090 = vunpack.c.l.b16 %v1050
        %v1091 = vunpack.c.h.b16 %v1050
        %v1092 = vunpack.c.l.b16 %v1051
        %v1093 = vunpack.c.h.b16 %v1051
        %v1094 = vunpack.c.l.b16 %v1052
        %v1095 = vunpack.c.h.b16 %v1052
        %v1096 = vunpack.c.l.b16 %v1053
        %v1097 = vunpack.c.h.b16 %v1053
        %v1098 = vunpack.c.l.b16 %v1054
        %v1099 = vunpack.c.h.b16 %v1054
        %v1100 = vunpack.c.l.b16 %v1055
        %v1101 = vunpack.c.h.b16 %v1055
        %v1102 = vunpack.c.l.b16 %v1056
        %v1103 = vunpack.c.h.b16 %v1056
        %v1104 = vunpack.c.l.b16 %v1057
        %v1105 = vunpack.c.h.b16 %v1057
        %v1106 = vpack.c.b16 %v1074, %v1074
        %v1107 = vpack.c.b16 %v1075, %v1075
        %v1108 = vpack.c.b16 %v1076, %v1076
        %v1109 = vpack.c.b16 %v1077, %v1077
        %v1110 = vpack.c.b16 %v1078, %v1078
        %v1111 = vpack.c.b16 %v1079, %v1079
        %v1112 = vpack.c.b16 %v1080, %v1080
        %v1113 = vpack.c.b16 %v1081, %v1081
        %v1114 = vpack.c.b16 %v1082, %v1082
        %v1115 = vpack.c.b16 %v1083, %v1083
        %v1116 = vpack.c.b16 %v1084, %v1084
        %v1117 = vpack.c.b16 %v1085, %v1085
        %v1118 = vpack.c.b16 %v1086, %v1086
        %v1119 = vpack.c.b16 %v1087, %v1087
        %v1120 = vpack.c.b16 %v1088, %v1088
        %v1121 = vpack.c.b16 %v1089, %v1089
        %v1122 = vpack.c.b16 %v1090, %v1090
        %v1123 = vpack.c.b16 %v1091, %v1091
        %v1124 = vpack.c.b16 %v1092, %v1092
        %v1125 = vpack.c.b16 %v1093, %v1093
        %v1126 = vpack.c.b16 %v1094, %v1094
        %v1127 = vpack.c.b16 %v1095, %v1095
        %v1128 = vpack.c.b16 %v1096, %v1096
        %v1129 = vpack.c.b16 %v1097, %v1097
        %v1130 = vpack.c.b16 %v1098, %v1098
        %v1131 = vpack.c.b16 %v1099, %v1099
        %v1132 = vpack.c.b16 %v1100, %v1100
        %v1133 = vpack.c.b16 %v1101, %v1101
        %v1134 = vpack.c.b16 %v1102, %v1102
        %v1135 = vpack.c.b16 %v1103, %v1103
        %v1136 = vpack.c.b16 %v1104, %v1104
        %v1137 = vpack.c.b16 %v1105, %v1105
        %1170 = vst [vmem:[%s290] sm:$0xf] %v1106
        %1171 = vst [vmem:[%s290 + $0x4] sm:$0xf] %v1107
        %1172 = vst [vmem:[%s290 + $0x8] sm:$0xf] %v1108
        %1173 = vst [vmem:[%s290 + $0xc] sm:$0xf] %v1109
        %1174 = vst [vmem:[%s290 + $0x10] sm:$0xf] %v1110
        %1175 = vst [vmem:[%s290 + $0x14] sm:$0xf] %v1111
        %1176 = vst [vmem:[%s290 + $0x18] sm:$0xf] %v1112
        %1177 = vst [vmem:[%s290 + $0x1c] sm:$0xf] %v1113
        %1178 = vst [vmem:[%s290 + $0x20] sm:$0xf] %v1114
        %1179 = vst [vmem:[%s290 + $0x24] sm:$0xf] %v1115
        %1180 = vst [vmem:[%s290 + $0x28] sm:$0xf] %v1116
        %1181 = vst [vmem:[%s290 + $0x2c] sm:$0xf] %v1117
        %1182 = vst [vmem:[%s290 + $0x30] sm:$0xf] %v1118
        %1183 = vst [vmem:[%s290 + $0x34] sm:$0xf] %v1119
        %1184 = vst [vmem:[%s290 + $0x38] sm:$0xf] %v1120
        %1185 = vst [vmem:[%s290 + $0x3c] sm:$0xf] %v1121
        %1186 = vst [vmem:[%s290 + $0x40] sm:$0xf] %v1122
        %1187 = vst [vmem:[%s290 + $0x44] sm:$0xf] %v1123
        %1188 = vst [vmem:[%s290 + $0x48] sm:$0xf] %v1124
        %1189 = vst [vmem:[%s290 + $0x4c] sm:$0xf] %v1125
        %1190 = vst [vmem:[%s290 + $0x50] sm:$0xf] %v1126
        %1191 = vst [vmem:[%s290 + $0x54] sm:$0xf] %v1127
        %1192 = vst [vmem:[%s290 + $0x58] sm:$0xf] %v1128
        %1193 = vst [vmem:[%s290 + $0x5c] sm:$0xf] %v1129
        %1194 = vst [vmem:[%s290 + $0x60] sm:$0xf] %v1130
        %1195 = vst [vmem:[%s290 + $0x64] sm:$0xf] %v1131
        %1196 = vst [vmem:[%s290 + $0x68] sm:$0xf] %v1132
        %1197 = vst [vmem:[%s290 + $0x6c] sm:$0xf] %v1133
        %1198 = vst [vmem:[%s290 + $0x70] sm:$0xf] %v1134
        %1199 = vst [vmem:[%s290 + $0x74] sm:$0xf] %v1135
        %1200 = vst [vmem:[%s290 + $0x78] sm:$0xf] %v1136
        %1201 = vst [vmem:[%s290 + $0x7c] sm:$0xf] %v1137
        %v1202 = vpack.c.bf16 %v759, %v756
        %v1203 = vpack.c.bf16 %v767, %v764
        %v1204 = vpack.c.bf16 %v775, %v772
        %v1205 = vpack.c.bf16 %v783, %v780
        %v1206 = vpack.c.bf16 %v791, %v788
        %v1207 = vpack.c.bf16 %v799, %v796
        %v1208 = vpack.c.bf16 %v807, %v804
        %v1209 = vpack.c.bf16 %v815, %v812
        %v1210 = vpack.c.bf16 %v823, %v820
        %v1211 = vpack.c.bf16 %v831, %v828
        %v1212 = vpack.c.bf16 %v839, %v836
        %v1213 = vpack.c.bf16 %v847, %v844
        %v1214 = vpack.c.bf16 %v855, %v852
        %v1215 = vpack.c.bf16 %v863, %v860
        %v1216 = vpack.c.bf16 %v871, %v868
        %v1217 = vpack.c.bf16 %v879, %v876
        %v1234 = vunpack.c.l.b16 %v1202
        %v1235 = vunpack.c.h.b16 %v1202
        %v1236 = vunpack.c.l.b16 %v1203
        %v1237 = vunpack.c.h.b16 %v1203
        %v1238 = vunpack.c.l.b16 %v1204
        %v1239 = vunpack.c.h.b16 %v1204
        %v1240 = vunpack.c.l.b16 %v1205
        %v1241 = vunpack.c.h.b16 %v1205
        %v1242 = vunpack.c.l.b16 %v1206
        %v1243 = vunpack.c.h.b16 %v1206
        %v1244 = vunpack.c.l.b16 %v1207
        %v1245 = vunpack.c.h.b16 %v1207
        %v1246 = vunpack.c.l.b16 %v1208
        %v1247 = vunpack.c.h.b16 %v1208
        %v1248 = vunpack.c.l.b16 %v1209
        %v1249 = vunpack.c.h.b16 %v1209
        %v1250 = vunpack.c.l.b16 %v1210
        %v1251 = vunpack.c.h.b16 %v1210
        %v1252 = vunpack.c.l.b16 %v1211
        %v1253 = vunpack.c.h.b16 %v1211
        %v1254 = vunpack.c.l.b16 %v1212
        %v1255 = vunpack.c.h.b16 %v1212
        %v1256 = vunpack.c.l.b16 %v1213
        %v1257 = vunpack.c.h.b16 %v1213
        %v1258 = vunpack.c.l.b16 %v1214
        %v1259 = vunpack.c.h.b16 %v1214
        %v1260 = vunpack.c.l.b16 %v1215
        %v1261 = vunpack.c.h.b16 %v1215
        %v1262 = vunpack.c.l.b16 %v1216
        %v1263 = vunpack.c.h.b16 %v1216
        %v1264 = vunpack.c.l.b16 %v1217
        %v1265 = vunpack.c.h.b16 %v1217
        %v1266 = vpack.c.b16 %v1234, %v1234
        %v1267 = vpack.c.b16 %v1235, %v1235
        %v1268 = vpack.c.b16 %v1236, %v1236
        %v1269 = vpack.c.b16 %v1237, %v1237
        %v1270 = vpack.c.b16 %v1238, %v1238
        %v1271 = vpack.c.b16 %v1239, %v1239
        %v1272 = vpack.c.b16 %v1240, %v1240
        %v1273 = vpack.c.b16 %v1241, %v1241
        %v1274 = vpack.c.b16 %v1242, %v1242
        %v1275 = vpack.c.b16 %v1243, %v1243
        %v1276 = vpack.c.b16 %v1244, %v1244
        %v1277 = vpack.c.b16 %v1245, %v1245
        %v1278 = vpack.c.b16 %v1246, %v1246
        %v1279 = vpack.c.b16 %v1247, %v1247
        %v1280 = vpack.c.b16 %v1248, %v1248
        %v1281 = vpack.c.b16 %v1249, %v1249
        %v1282 = vpack.c.b16 %v1250, %v1250
        %v1283 = vpack.c.b16 %v1251, %v1251
        %v1284 = vpack.c.b16 %v1252, %v1252
        %v1285 = vpack.c.b16 %v1253, %v1253
        %v1286 = vpack.c.b16 %v1254, %v1254
        %v1287 = vpack.c.b16 %v1255, %v1255
        %v1288 = vpack.c.b16 %v1256, %v1256
        %v1289 = vpack.c.b16 %v1257, %v1257
        %v1290 = vpack.c.b16 %v1258, %v1258
        %v1291 = vpack.c.b16 %v1259, %v1259
        %v1292 = vpack.c.b16 %v1260, %v1260
        %v1293 = vpack.c.b16 %v1261, %v1261
        %v1294 = vpack.c.b16 %v1262, %v1262
        %v1295 = vpack.c.b16 %v1263, %v1263
        %v1296 = vpack.c.b16 %v1264, %v1264
        %v1297 = vpack.c.b16 %v1265, %v1265
        %1330 = vst [vmem:[%s297] sm:$0xf] %v1266
        %1331 = vst [vmem:[%s297 + $0x4] sm:$0xf] %v1267
        %1332 = vst [vmem:[%s297 + $0x8] sm:$0xf] %v1268
        %1333 = vst [vmem:[%s297 + $0xc] sm:$0xf] %v1269
        %1334 = vst [vmem:[%s297 + $0x10] sm:$0xf] %v1270
        %1335 = vst [vmem:[%s297 + $0x14] sm:$0xf] %v1271
        %1336 = vst [vmem:[%s297 + $0x18] sm:$0xf] %v1272
        %1337 = vst [vmem:[%s297 + $0x1c] sm:$0xf] %v1273
        %1338 = vst [vmem:[%s297 + $0x20] sm:$0xf] %v1274
        %1339 = vst [vmem:[%s297 + $0x24] sm:$0xf] %v1275
        %1340 = vst [vmem:[%s297 + $0x28] sm:$0xf] %v1276
        %1341 = vst [vmem:[%s297 + $0x2c] sm:$0xf] %v1277
        %1342 = vst [vmem:[%s297 + $0x30] sm:$0xf] %v1278
        %1343 = vst [vmem:[%s297 + $0x34] sm:$0xf] %v1279
        %1344 = vst [vmem:[%s297 + $0x38] sm:$0xf] %v1280
        %1345 = vst [vmem:[%s297 + $0x3c] sm:$0xf] %v1281
        %1346 = vst [vmem:[%s297 + $0x40] sm:$0xf] %v1282
        %1347 = vst [vmem:[%s297 + $0x44] sm:$0xf] %v1283
        %1348 = vst [vmem:[%s297 + $0x48] sm:$0xf] %v1284
        %1349 = vst [vmem:[%s297 + $0x4c] sm:$0xf] %v1285
        %1350 = vst [vmem:[%s297 + $0x50] sm:$0xf] %v1286
        %1351 = vst [vmem:[%s297 + $0x54] sm:$0xf] %v1287
        %1352 = vst [vmem:[%s297 + $0x58] sm:$0xf] %v1288
        %1353 = vst [vmem:[%s297 + $0x5c] sm:$0xf] %v1289
        %1354 = vst [vmem:[%s297 + $0x60] sm:$0xf] %v1290
        %1355 = vst [vmem:[%s297 + $0x64] sm:$0xf] %v1291
        %1356 = vst [vmem:[%s297 + $0x68] sm:$0xf] %v1292
        %1357 = vst [vmem:[%s297 + $0x6c] sm:$0xf] %v1293
        %1358 = vst [vmem:[%s297 + $0x70] sm:$0xf] %v1294
        %1359 = vst [vmem:[%s297 + $0x74] sm:$0xf] %v1295
        %1360 = vst [vmem:[%s297 + $0x78] sm:$0xf] %v1296
        %1361 = vst [vmem:[%s297 + $0x7c] sm:$0xf] %v1297
        %s1362 = sand.u32 %s119, 1
        %s1363 = scalar_lea.sflag [#allocation4], %s1362
        %s1364 = sand.u32 %s119, 1
        %s1365 = smul.addr %s1364, 128
        %s1366 = scalar_lea.vmem [#allocation7], %s1365
        %s1367 = sand.u32 %s27, 1
        %s1368 = scalar_lea.sflag [#allocation9], %s1367
        %s1369 = sand.u32 %s147, 1
        %s1370 = smul.addr %s1369, 128
        %s1371 = scalar_lea.vmem [#allocation8], %s1370
        %s1372 = sand.u32 %s27, 1
        %s1373 = scalar_lea.sflag [#allocation9], %s1372
        %s1374 = sand.u32 %s175, 1
        %s1375 = smul.addr %s1374, 128
        %s1376 = scalar_lea.vmem [#allocation10], %s1375
        // Predicated region
        $region41: #{tpu_custom_call.1} parent=31 // pred_check
          %p1377 = pneg %p129
        $region42: #{tpu_custom_call.1} parent=31 // pred_check_branch
          %1379 = sbr.rel (%p1377) target = $region44
        $region43: #{tpu_custom_call.1} parent=31 // pred_region
          %s1380 = smul.u32 32, %s32
          %s1382 = ssub.s32 2048, 2048
          %1383 = vsyncadd %s1363, %s1382
          %s1384 = smul.addr %s31, 64
          %s1385 = sadd.s32 %s1380, %s1384
          %s1386 = smul.addr %s1385, 64
          %s1387 = scalar_lea.hbm %s3, %s1386
          %s1388 = sshll.u32 %s1366, 4
          %s1389 = int_to_ptr.vmem [resolvable:$true] %s1388
          %1394 = dma.vmem_to_hbm [thread:$0]  %s1389, 2048, %s1387, %s1363, 64, 64, 4
        $region44: #{tpu_custom_call.1} parent=31 // pred_fallthru
          _
        // Predicated region
        $region45: #{tpu_custom_call.1} parent=31 // pred_check
          %p1395 = pneg %p157
        $region46: #{tpu_custom_call.1} parent=31 // pred_check_branch
          %1397 = sbr.rel (%p1395) target = $region48
        $region47: #{tpu_custom_call.1} parent=31 // pred_region
          %s1398 = smul.u32 32, %s32
          %s1400 = ssub.s32 2048, 2048
          %1401 = vsyncadd %s1368, %s1400
          %s1402 = smul.addr %s31, 64
          %s1403 = sadd.s32 %s1398, %s1402
          %s1404 = smul.addr %s1403, 64
          %s1405 = scalar_lea.hbm %s4, %s1404
          %s1406 = sshll.u32 %s1371, 4
          %s1407 = int_to_ptr.vmem [resolvable:$true] %s1406
          %1412 = dma.vmem_to_hbm [thread:$0]  %s1407, 2048, %s1405, %s1368, 64, 64, 4
        $region48: #{tpu_custom_call.1} parent=31 // pred_fallthru
          _
        // Predicated region
        $region49: #{tpu_custom_call.1} parent=31 // pred_check
          %p1413 = pneg %p185
        $region50: #{tpu_custom_call.1} parent=31 // pred_check_branch
          %1415 = sbr.rel (%p1413) target = $region52
        $region51: #{tpu_custom_call.1} parent=31 // pred_region
          %s1416 = smul.u32 32, %s32
          %s1418 = ssub.s32 2048, 2048
          %1419 = vsyncadd %s1373, %s1418
          %s1420 = smul.addr %s31, 64
          %s1421 = sadd.s32 %s1416, %s1420
          %s1422 = smul.addr %s1421, 64
          %s1423 = scalar_lea.hbm %s5, %s1422
          %s1424 = sshll.u32 %s1376, 4
          %s1425 = int_to_ptr.vmem [resolvable:$true] %s1424
          %1430 = dma.vmem_to_hbm [thread:$0]  %s1425, 2048, %s1423, %s1373, 64, 64, 4
        $region52: #{tpu_custom_call.1} parent=31 // pred_fallthru
          _
      $region32: #{tpu_custom_call.1} parent=5 // pred_fallthru
        _
      %p1431 = scmp.le.s32.totalorder 2, %s22
      // Predicated region
      $region53: #{tpu_custom_call.1} parent=5 // pred_check
        %p1432 = pneg %p1431
      $region54: #{tpu_custom_call.1} parent=5 // pred_check_branch
        %1434 = sbr.rel (%p1432) target = $region56
      $region55: #{tpu_custom_call.1} parent=5 // pred_region
        %s1435 = ssub.s32 %s22, 2
        // Predicated region
        $region57: #{tpu_custom_call.1} parent=55 // pred_check
          %p1436 = pneg %p135
        $region58: #{tpu_custom_call.1} parent=55 // pred_check_branch
          %1438 = sbr.rel (%p1436) target = $region60
        $region59: #{tpu_custom_call.1} parent=55 // pred_region
          %s1439 = sand.u32 %s120, 1
          %s1440 = scalar_lea.sflag [#allocation4], %s1439
          %s1441 = sand.u32 %s120, 1
          %s1442 = smul.addr %s1441, 128
          %s1443 = scalar_lea.vmem [#allocation7], %s1442
          %1444 = dma.done %s1440, 2048
        $region60: #{tpu_custom_call.1} parent=55 // pred_fallthru
          _
        // Predicated region
        $region61: #{tpu_custom_call.1} parent=55 // pred_check
          %p1445 = pneg %p163
        $region62: #{tpu_custom_call.1} parent=55 // pred_check_branch
          %1447 = sbr.rel (%p1445) target = $region64
        $region63: #{tpu_custom_call.1} parent=55 // pred_region
          %s1448 = sand.u32 %s28, 1
          %s1449 = scalar_lea.sflag [#allocation9], %s1448
          %s1450 = sand.u32 %s148, 1
          %s1451 = smul.addr %s1450, 128
          %s1452 = scalar_lea.vmem [#allocation8], %s1451
          %1453 = dma.done %s1449, 2048
        $region64: #{tpu_custom_call.1} parent=55 // pred_fallthru
          _
        // Predicated region
        $region65: #{tpu_custom_call.1} parent=55 // pred_check
          %p1454 = pneg %p191
        $region66: #{tpu_custom_call.1} parent=55 // pred_check_branch
          %1456 = sbr.rel (%p1454) target = $region68
        $region67: #{tpu_custom_call.1} parent=55 // pred_region
          %s1457 = sand.u32 %s28, 1
          %s1458 = scalar_lea.sflag [#allocation9], %s1457
          %s1459 = sand.u32 %s176, 1
          %s1460 = smul.addr %s1459, 128
          %s1461 = scalar_lea.vmem [#allocation10], %s1460
          %1462 = dma.done %s1458, 2048
        $region68: #{tpu_custom_call.1} parent=55 // pred_fallthru
          _
      $region56: #{tpu_custom_call.1} parent=5 // pred_fallthru
        _
    $region6: #{tpu_custom_call.1} parent=1 // loop_footer
      %s26 = sadd.s32 1, %s22
    $region7: #{tpu_custom_call.1} parent=1 // loop_footer_branch
      %21 = sbr.rel target = $region3
    $region8: #{tpu_custom_call.1} parent=1 // loop_exit
      _
    %1463 = vsyncpa [#allocation3], 1
    %s1464 = scalar_lea.sflag [#allocation3], 1
    %1465 = vsyncpa %s1464, 1
    %1466 = vsyncpa [#allocation6], 1
    %1467 = vsyncpa [#allocation4], 1
    %s1468 = scalar_lea.sflag [#allocation4], 1
    %1469 = vsyncpa %s1468, 1
    %1470 = vsyncpa [#allocation9], 1
    %s1471 = scalar_lea.sflag [#allocation9], 1
    %1472 = vsyncpa %s1471, 1

</llo_original>
